<compile_context>
chip_gen: v6e
topology: v6e:2x2x1
jax: 0.10.0
libtpu: 0.0.40
codegen_flags: <defaults>
</compile_context>

<pallas_src>
import functools
import math

import jax
import jax.numpy as jnp
import numpy as np
from jax.experimental import pallas as pl
from jax.experimental.pallas import tpu as pltpu


def _round_up(x, m):
    return ((x + m - 1) // m) * m


def _block_spec(shape, index_map, buffers=None):
    """BlockSpec with an optional buffer-count override (graceful fallback)."""
    if buffers is not None and hasattr(pl, "Buffered"):
        try:
            return pl.BlockSpec(shape, index_map, pipeline_mode=pl.Buffered(buffers))
        except TypeError:  # older jax without pipeline_mode kwarg
            pass
    return pl.BlockSpec(shape, index_map)


def actor_kernel(x_ref, w1_ref, b1_ref, w2_ref, b2_ref, w3_ref, b3_ref,
                 scale_ref, clamp_ref, out_ref, *, aseq_dim):
    # x lanes: [action_seq (aseq_dim) | state (state_dim) | zero padding]
    x = x_ref[...]                                            # (TB, IN_PAD) f32
    xb = x.astype(jnp.bfloat16)
    # l1 + ReLU  (the torch.cat is already fused into the packed input / merged w1)
    h1 = jnp.dot(xb, w1_ref[...], preferred_element_type=jnp.float32)
    h1 = jnp.maximum(h1 + b1_ref[...], 0.0)
    # l2 + ReLU
    h2 = jnp.dot(h1.astype(jnp.bfloat16), w2_ref[...],
                 preferred_element_type=jnp.float32)
    h2 = jnp.maximum(h2 + b2_ref[...], 0.0)
    # l3 -> phi * max_action * tanh(.)
    a = jnp.dot(h2.astype(jnp.bfloat16), w3_ref[...],
                preferred_element_type=jnp.float32)
    a = scale_ref[...] * jnp.tanh(a + b3_ref[...])
    # residual add + clamp(+- max_action[:action_dim])
    lim = clamp_ref[...]
    out_ref[...] = jnp.clip(a + x[:, :aseq_dim], -lim, lim)


class ActorPallas:
    H1 = 512   # 400 padded up to a lane multiple (zero padding)
    H2 = 384   # 300 padded up to a lane multiple (zero padding)

    def __init__(self, state_dim, action_dim, action_seq_dim, max_action,
                 n_action_steps, phi=0.05, key=None):
        assert action_seq_dim == n_action_steps * action_dim
        self.state_dim = state_dim
        self.action_dim = action_dim
        self.action_seq_dim = action_seq_dim
        self.n_action_steps = n_action_steps
        self.phi = phi
        self.max_action = jnp.asarray(max_action, jnp.float32)  # (action_seq_dim,)

        in_dim = state_dim + action_seq_dim
        self.in_pad = _round_up(in_dim, 128)

        if key is None:
            key = jax.random.PRNGKey(0)

        def linear_init(k, fan_in, fan_out):
            kw, kb = jax.random.split(k)
            bound = 1.0 / np.sqrt(fan_in)
            w = jax.random.uniform(kw, (fan_in, fan_out), jnp.float32, -bound, bound)
            b = jax.random.uniform(kb, (1, fan_out), jnp.float32, -bound, bound)
            return w, b

        k1, k2, k3 = jax.random.split(key, 3)
        # Unpadded f32 params (used by the pure-JAX reference).
        self.w1, self.b1 = linear_init(k1, in_dim, 400)
        self.w2, self.b2 = linear_init(k2, 400, 300)
        self.w3, self.b3 = linear_init(k3, 300, action_seq_dim)

        H1, H2 = self.H1, self.H2
        # Layer-1 weight re-ordered to match the packed [aseq | state] input and
        # merged into one (in_pad, H1) bf16 matrix; zero rows under the padding
        # lanes keep the math exact regardless of padding contents.
        w1_packed = jnp.concatenate([self.w1[state_dim:], self.w1[:state_dim]], axis=0)
        self.k_w1 = jnp.pad(
            w1_packed, ((0, self.in_pad - in_dim), (0, H1 - 400))).astype(jnp.bfloat16)
        self.k_b1 = jnp.pad(self.b1, ((0, 0), (0, H1 - 400)))               # f32
        self.k_w2 = jnp.pad(self.w2, ((0, H1 - 400), (0, H2 - 300))).astype(jnp.bfloat16)
        self.k_b2 = jnp.pad(self.b2, ((0, 0), (0, H2 - 300)))               # f32
        # Output path stays at the true action_seq_dim (32 lanes).
        self.k_w3 = jnp.pad(self.w3, ((0, H2 - 300), (0, 0))).astype(jnp.bfloat16)
        self.k_b3 = self.b3                                                  # (1, aseq) f32
        self.k_scale = (self.phi * self.max_action).reshape(1, action_seq_dim)
        self.k_clamp = jnp.tile(self.max_action[:action_dim],
                                (n_action_steps,)).reshape(1, action_seq_dim)

    # ------------------------------------------------------------------ #
    def _forward(self, x, TB, B_pad, use_buffered):
        S_in, H1, H2, OUT = self.in_pad, self.H1, self.H2, self.action_seq_dim
        stream = 3 if use_buffered else None   # streamed activation tiles
        single = 1 if use_buffered else None   # VMEM-resident weights

        def batch_map(i):
            return (i, 0)

        def pinned(i):
            return (0, 0)

        kernel = functools.partial(actor_kernel, aseq_dim=OUT)

        return pl.pallas_call(
            kernel,
            out_shape=jax.ShapeDtypeStruct((B_pad, OUT), jnp.float32),
            grid=(B_pad // TB,),
            in_specs=[
                _block_spec((TB, S_in), batch_map, stream),   # packed [aseq|state]
                _block_spec((S_in, H1), pinned, single),      # w1 (bf16, merged)
                _block_spec((1, H1), pinned, single),         # b1
                _block_spec((H1, H2), pinned, single),        # w2 (bf16)
                _block_spec((1, H2), pinned, single),         # b2
                _block_spec((H2, OUT), pinned, single),       # w3 (bf16)
                _block_spec((1, OUT), pinned, single),        # b3
                _block_spec((1, OUT), pinned, single),        # phi * max_action
                _block_spec((1, OUT), pinned, single),        # clamp bound
            ],
            out_specs=_block_spec((TB, OUT), batch_map, stream),
            compiler_params=pltpu.CompilerParams(
                dimension_semantics=("parallel",),
                vmem_limit_bytes=32 * 1024 * 1024,
            ),
        )(x, self.k_w1, self.k_b1, self.k_w2, self.k_b2,
          self.k_w3, self.k_b3, self.k_scale, self.k_clamp)

    def __call__(self, state, action_seq):
        B = action_seq.shape[0]
        aseq_flat = action_seq.reshape(B, -1).astype(jnp.float32)   # (B, aseq_dim)
        state = state.astype(jnp.float32)
        packed = jnp.concatenate([aseq_flat, state], axis=1)        # (B, in_dim)

        # Batch tiling: >= 2 grid steps whenever B > 8 (megacore + pipelining),
        # tiles capped at 256 rows, padding waste kept small.
        n_steps = max(1, math.ceil(B / 256))
        if B > 8:
            n_steps = max(n_steps, 2)
        TB = max(8, _round_up(math.ceil(B / n_steps), 8))
        B_pad = _round_up(B, TB)

        x = jnp.pad(packed, ((0, B_pad - B), (0, self.in_pad - packed.shape[1])))

        try:
            out_p = self._forward(x, TB, B_pad, use_buffered=True)
            out_p = jax.block_until_ready(out_p)
        except Exception:  # pragma: no cover — fallback if Buffered(...) rejected
            out_p = self._forward(x, TB, B_pad, use_buffered=False)

        out = out_p[:B, :]
        return out.reshape(B, self.n_action_steps, self.action_dim)

    # Pure-JAX reference mirroring the PyTorch forward (unpadded f32 params).
    def reference(self, state, action_seq):
        B = action_seq.shape[0]
        aseq_flat = action_seq.reshape(B, -1)
        x = jnp.concatenate([state, aseq_flat], axis=1)
        a = jax.nn.relu(x @ self.w1 + self.b1)
        a = jax.nn.relu(a @ self.w2 + self.b2)
        a = self.phi * self.max_action * jnp.tanh(a @ self.w3 + self.b3)
        a = a.reshape(B, self.n_action_steps, -1)
        lim = self.max_action[: self.action_dim]
        return jnp.clip(a + action_seq, -lim, lim)


if __name__ == "__main__":
    # Small shapes consistent with the module's forward.
    state_dim = 16
    action_dim = 4
    n_action_steps = 8
    action_seq_dim = n_action_steps * action_dim  # 32

    key = jax.random.PRNGKey(0)
    k_params, k_max, k_data = jax.random.split(key, 3)
    max_action = jax.random.uniform(k_max, (action_seq_dim,), jnp.float32, 0.5, 1.5)

    actor = ActorPallas(state_dim, action_dim, action_seq_dim, max_action,
                        n_action_steps, phi=0.05, key=k_params)

    # Case 1: tiny batch (single grid step).
    # Case 2: B > tile and not a multiple of 8 (multi-tile + padded-batch path).
    for case_i, B in enumerate((2, 37)):
        ks, ka = jax.random.split(jax.random.fold_in(k_data, case_i))
        state = jax.random.normal(ks, (B, state_dim), jnp.float32)
        action_seq = jax.random.normal(ka, (B, n_action_steps, action_dim), jnp.float32)

        out = jax.block_until_ready(actor(state, action_seq))
        ref = jax.block_until_ready(actor.reference(state, action_seq))
        assert out.shape == (B, n_action_steps, action_dim)
        # bf16 matmul operands (f32 accumulation) -> relaxed tolerance.
        np.testing.assert_allclose(np.asarray(out), np.asarray(ref),
                                   rtol=1e-2, atol=1e-2)

    print("KERNEL_OK")
</pallas_src>

<mosaic_0001>
module attributes {stable_mosaic.version = 11 : i64} {
  func.func @actor_kernel(%arg0: i32, %arg1: memref<8x128xf32, #tpu.memory_space<vmem>>, %arg2: memref<128x512xbf16, #tpu.memory_space<vmem>>, %arg3: memref<1x512xf32, #tpu.memory_space<vmem>>, %arg4: memref<512x384xbf16, #tpu.memory_space<vmem>>, %arg5: memref<1x384xf32, #tpu.memory_space<vmem>>, %arg6: memref<384x32xbf16, #tpu.memory_space<vmem>>, %arg7: memref<1x32xf32, #tpu.memory_space<vmem>>, %arg8: memref<1x32xf32, #tpu.memory_space<vmem>>, %arg9: memref<1x32xf32, #tpu.memory_space<vmem>>, %arg10: memref<8x32xf32, #tpu.memory_space<vmem>>) attributes {dimension_semantics = [#tpu.dimension_semantics<parallel>], iteration_bounds = array<i64: 1>, scalar_prefetch = 0 : i64, scratch_operands = 0 : i64, tpu.core_type = #tpu.core_type<tc>, window_params = [{transform_indices = @transform_0, window_bounds = array<i64: 8, 128>}, {pipeline_mode = #tpu.pipeline_mode<synchronous>, transform_indices = @transform_1, window_bounds = array<i64: 128, 512>}, {pipeline_mode = #tpu.pipeline_mode<synchronous>, transform_indices = @transform_2, window_bounds = array<i64: 1, 512>}, {pipeline_mode = #tpu.pipeline_mode<synchronous>, transform_indices = @transform_3, window_bounds = array<i64: 512, 384>}, {pipeline_mode = #tpu.pipeline_mode<synchronous>, transform_indices = @transform_4, window_bounds = array<i64: 1, 384>}, {pipeline_mode = #tpu.pipeline_mode<synchronous>, transform_indices = @transform_5, window_bounds = array<i64: 384, 32>}, {pipeline_mode = #tpu.pipeline_mode<synchronous>, transform_indices = @transform_6, window_bounds = array<i64: 1, 32>}, {pipeline_mode = #tpu.pipeline_mode<synchronous>, transform_indices = @transform_7, window_bounds = array<i64: 1, 32>}, {pipeline_mode = #tpu.pipeline_mode<synchronous>, transform_indices = @transform_8, window_bounds = array<i64: 1, 32>}, {transform_indices = @transform_9, window_bounds = array<i64: 8, 32>}]} {
    %c0 = arith.constant 0 : index
    %c0_0 = arith.constant 0 : index
    %0 = vector.load %arg1[%c0, %c0_0] : memref<8x128xf32, #tpu.memory_space<vmem>>, vector<8x128xf32>
    %1 = arith.truncf %0 : vector<8x128xf32> to vector<8x128xbf16>
    %c0_1 = arith.constant 0 : index
    %c0_2 = arith.constant 0 : index
    %2 = vector.load %arg2[%c0_1, %c0_2] : memref<128x512xbf16, #tpu.memory_space<vmem>>, vector<128x512xbf16>
    %cst = arith.constant dense<0.000000e+00> : vector<8x512xf32>
    %3 = tpu.matmul %1, %2, %cst {dimension_numbers = #tpu.dot_dimension_numbers<[1], [0], [0], [1], [0, 0, 1, 1], [], []>} : vector<8x128xbf16>, vector<128x512xbf16>, vector<8x512xf32> -> vector<8x512xf32>
    %c0_3 = arith.constant 0 : index
    %c0_4 = arith.constant 0 : index
    %4 = vector.load %arg3[%c0_3, %c0_4] : memref<1x512xf32, #tpu.memory_space<vmem>>, vector<1x512xf32>
    %5 = vector.broadcast %4 : vector<1x512xf32> to vector<8x512xf32>
    %6 = arith.addf %3, %5 : vector<8x512xf32>
    %cst_5 = arith.constant 0.000000e+00 : f32
    %7 = vector.broadcast %cst_5 : f32 to vector<8x512xf32>
    %8 = arith.maximumf %6, %7 : vector<8x512xf32>
    %9 = arith.truncf %8 : vector<8x512xf32> to vector<8x512xbf16>
    %c0_6 = arith.constant 0 : index
    %c0_7 = arith.constant 0 : index
    %10 = vector.load %arg4[%c0_6, %c0_7] : memref<512x384xbf16, #tpu.memory_space<vmem>>, vector<512x384xbf16>
    %cst_8 = arith.constant dense<0.000000e+00> : vector<8x384xf32>
    %11 = tpu.matmul %9, %10, %cst_8 {dimension_numbers = #tpu.dot_dimension_numbers<[1], [0], [0], [1], [0, 0, 1, 1], [], []>} : vector<8x512xbf16>, vector<512x384xbf16>, vector<8x384xf32> -> vector<8x384xf32>
    %c0_9 = arith.constant 0 : index
    %c0_10 = arith.constant 0 : index
    %12 = vector.load %arg5[%c0_9, %c0_10] : memref<1x384xf32, #tpu.memory_space<vmem>>, vector<1x384xf32>
    %13 = vector.broadcast %12 : vector<1x384xf32> to vector<8x384xf32>
    %14 = arith.addf %11, %13 : vector<8x384xf32>
    %cst_11 = arith.constant 0.000000e+00 : f32
    %15 = vector.broadcast %cst_11 : f32 to vector<8x384xf32>
    %16 = arith.maximumf %14, %15 : vector<8x384xf32>
    %17 = arith.truncf %16 : vector<8x384xf32> to vector<8x384xbf16>
    %c0_12 = arith.constant 0 : index
    %c0_13 = arith.constant 0 : index
    %18 = vector.load %arg6[%c0_12, %c0_13] : memref<384x32xbf16, #tpu.memory_space<vmem>>, vector<384x32xbf16>
    %cst_14 = arith.constant dense<0.000000e+00> : vector<8x32xf32>
    %19 = tpu.matmul %17, %18, %cst_14 {dimension_numbers = #tpu.dot_dimension_numbers<[1], [0], [0], [1], [0, 0, 1, 1], [], []>} : vector<8x384xbf16>, vector<384x32xbf16>, vector<8x32xf32> -> vector<8x32xf32>
    %c0_15 = arith.constant 0 : index
    %c0_16 = arith.constant 0 : index
    %20 = vector.load %arg8[%c0_15, %c0_16] : memref<1x32xf32, #tpu.memory_space<vmem>>, vector<1x32xf32>
    %c0_17 = arith.constant 0 : index
    %c0_18 = arith.constant 0 : index
    %21 = vector.load %arg7[%c0_17, %c0_18] : memref<1x32xf32, #tpu.memory_space<vmem>>, vector<1x32xf32>
    %22 = vector.broadcast %21 : vector<1x32xf32> to vector<8x32xf32>
    %23 = arith.addf %19, %22 : vector<8x32xf32>
    %24 = math.tanh %23 : vector<8x32xf32>
    %25 = vector.broadcast %20 : vector<1x32xf32> to vector<8x32xf32>
    %26 = arith.mulf %25, %24 : vector<8x32xf32>
    %c0_19 = arith.constant 0 : index
    %c0_20 = arith.constant 0 : index
    %27 = vector.load %arg9[%c0_19, %c0_20] : memref<1x32xf32, #tpu.memory_space<vmem>>, vector<1x32xf32>
    %28 = vector.extract_strided_slice %0 {offsets = [0, 0], sizes = [8, 32], strides = [1, 1]} : vector<8x128xf32> to vector<8x32xf32>
    %29 = arith.addf %26, %28 : vector<8x32xf32>
    %cst_21 = arith.constant 0.000000e+00 : f32
    %30 = vector.broadcast %cst_21 : f32 to vector<1x32xf32>
    %31 = arith.subf %30, %27 : vector<1x32xf32>
    %32 = vector.broadcast %31 : vector<1x32xf32> to vector<8x32xf32>
    %33 = arith.maximumf %32, %29 : vector<8x32xf32>
    %34 = vector.broadcast %27 : vector<1x32xf32> to vector<8x32xf32>
    %35 = arith.minimumf %34, %33 : vector<8x32xf32>
    %c0_22 = arith.constant 0 : index
    %c0_23 = arith.constant 0 : index
    %36 = vector.load %arg10[%c0_22, %c0_23] : memref<8x32xf32, #tpu.memory_space<vmem>>, vector<8x32xf32>
    tpu.vector_store %arg10[%c0_22, %c0_23], %35 {strides = array<i32>} : memref<8x32xf32, #tpu.memory_space<vmem>>, vector<8x32xf32>,
    return
  }
  func.func @transform_0(%arg0: i32) -> (i32, i32) {
    %c0_i32 = arith.constant 0 : i32
    %c0_i32_0 = arith.constant 0 : i32
    return %arg0, %c0_i32 : i32, i32
  }
  func.func @transform_1(%arg0: i32) -> (i32, i32) {
    %c0_i32 = arith.constant 0 : i32
    %c0_i32_0 = arith.constant 0 : i32
    %c0_i32_1 = arith.constant 0 : i32
    return %c0_i32, %c0_i32_0 : i32, i32
  }
  func.func @transform_2(%arg0: i32) -> (i32, i32) {
    %c0_i32 = arith.constant 0 : i32
    %c0_i32_0 = arith.constant 0 : i32
    %c0_i32_1 = arith.constant 0 : i32
    return %c0_i32, %c0_i32_0 : i32, i32
  }
  func.func @transform_3(%arg0: i32) -> (i32, i32) {
    %c0_i32 = arith.constant 0 : i32
    %c0_i32_0 = arith.constant 0 : i32
    %c0_i32_1 = arith.constant 0 : i32
    return %c0_i32, %c0_i32_0 : i32, i32
  }
  func.func @transform_4(%arg0: i32) -> (i32, i32) {
    %c0_i32 = arith.constant 0 : i32
    %c0_i32_0 = arith.constant 0 : i32
    %c0_i32_1 = arith.constant 0 : i32
    return %c0_i32, %c0_i32_0 : i32, i32
  }
  func.func @transform_5(%arg0: i32) -> (i32, i32) {
    %c0_i32 = arith.constant 0 : i32
    %c0_i32_0 = arith.constant 0 : i32
    %c0_i32_1 = arith.constant 0 : i32
    return %c0_i32, %c0_i32_0 : i32, i32
  }
  func.func @transform_6(%arg0: i32) -> (i32, i32) {
    %c0_i32 = arith.constant 0 : i32
    %c0_i32_0 = arith.constant 0 : i32
    %c0_i32_1 = arith.constant 0 : i32
    return %c0_i32, %c0_i32_0 : i32, i32
  }
  func.func @transform_7(%arg0: i32) -> (i32, i32) {
    %c0_i32 = arith.constant 0 : i32
    %c0_i32_0 = arith.constant 0 : i32
    %c0_i32_1 = arith.constant 0 : i32
    return %c0_i32, %c0_i32_0 : i32, i32
  }
  func.func @transform_8(%arg0: i32) -> (i32, i32) {
    %c0_i32 = arith.constant 0 : i32
    %c0_i32_0 = arith.constant 0 : i32
    %c0_i32_1 = arith.constant 0 : i32
    return %c0_i32, %c0_i32_0 : i32, i32
  }
  func.func @transform_9(%arg0: i32) -> (i32, i32) {
    %c0_i32 = arith.constant 0 : i32
    %c0_i32_0 = arith.constant 0 : i32
    return %arg0, %c0_i32 : i32, i32
  }
}

</mosaic_0001>

<llo_original>
// kernel: tpu_custom_call.1
$region0: #{tpu_custom_call.1}
  #allocation0 [shape = 'u32[]', space=smem, size = 0x4, offset = 0x4, fixed_abs, tag = 'smem constant byte address 0x4 - core index']
  #allocation1 [shape = 'u32[144,128]{1,0:T(1,128)}', space=vmem, size = 0x12000, scoped, tag = 'internal scratch']
  %s0 = inlined_call_operand.vmem [shape: f32[8,128], index: 0, kind: input, shape index: {}]
  %s1 = inlined_call_operand.hbm [shape: bf16[128,512], index: 1, kind: input, shape index: {}]
  %s2 = inlined_call_operand.vmem [shape: f32[1,512], index: 2, kind: input, shape index: {}]
  %s3 = inlined_call_operand.hbm [shape: bf16[512,384], index: 3, kind: input, shape index: {}]
  %s4 = inlined_call_operand.vmem [shape: f32[1,384], index: 4, kind: input, shape index: {}]
  %s5 = inlined_call_operand.vmem [shape: bf16[384,32], index: 5, kind: input, shape index: {}]
  %s6 = inlined_call_operand.vmem [shape: f32[1,32], index: 6, kind: input, shape index: {}]
  %s7 = inlined_call_operand.vmem [shape: f32[1,32], index: 7, kind: input, shape index: {}]
  %s8 = inlined_call_operand.vmem [shape: f32[1,32], index: 8, kind: input, shape index: {}]
  %s9 = inlined_call_operand.hbm [shape: f32[8,32], index: 9, kind: output, shape index: {}]
  %s10 = sld [smem:[#allocation0]]
  $region54: #{tpu_custom_call.1} parent=0
    _
  %s12 = ssub.s32 1, %s10
  %s13 = scalar_select 0, %s12, %s10
  $region1: #{tpu_custom_call.1} parent=0
    #allocation2 [shape = 'u8[131072]{0}', space=vmem, size = 0x20000, scoped, tag = 'input window, operand 1, single buffered']
    #allocation3 [shape = 's32[1]{0}', space=sflag, size = 0x4, scoped, tag = 'scoped memory for tpu_custom_call.1']
    #allocation4 [shape = 's32[1]{0}', space=sflag, size = 0x4, scoped, tag = 'scoped memory for tpu_custom_call.1']
    #allocation5 [shape = 'u8[393216]{0}', space=vmem, size = 0x60000, scoped, tag = 'input window, operand 3, single buffered']
    #allocation6 [shape = 's32[1]{0}', space=sflag, size = 0x4, scoped, tag = 'scoped memory for tpu_custom_call.1']
    #allocation7 [shape = 'u8[4096]{0}', space=vmem, size = 0x1000, scoped, tag = 'output window, operand 0, single buffered']
    %14 = vsyncpa [#allocation3], 0
    %15 = vsyncpa [#allocation6], 0
    %16 = vsyncpa [#allocation4], 0
    // Predicated region
    $region2: #{tpu_custom_call.1} parent=1 // pred_check
      _
    $region3: #{tpu_custom_call.1} parent=1 // pred_check_branch
      %18 = sbr.rel (0) target = $region5
    $region4: #{tpu_custom_call.1} parent=1 // pred_region
      _
    $region5: #{tpu_custom_call.1} parent=1 // pred_fallthru
      _
    // Predicated region
    $region6: #{tpu_custom_call.1} parent=1 // pred_check
      _
    $region7: #{tpu_custom_call.1} parent=1 // pred_check_branch
      %20 = sbr.rel (0) target = $region9
    $region8: #{tpu_custom_call.1} parent=1 // pred_region
      %s22 = ssub.s32 4096, 4096
      %23 = vsyncadd [#allocation3], %s22
      %s24 = sshll.u32 [#allocation2], 4
      %s25 = int_to_ptr.vmem [resolvable:$true] %s24
      %30 = dma.hbm_to_vmem [thread:$0]  %s1, 4096, %s25, [#allocation3], 256, 256, 16
    $region9: #{tpu_custom_call.1} parent=1 // pred_fallthru
      _
    // Predicated region
    $region10: #{tpu_custom_call.1} parent=1 // pred_check
      _
    $region11: #{tpu_custom_call.1} parent=1 // pred_check_branch
      %32 = sbr.rel (0) target = $region13
    $region12: #{tpu_custom_call.1} parent=1 // pred_region
      _
    $region13: #{tpu_custom_call.1} parent=1 // pred_fallthru
      _
    // Predicated region
    $region14: #{tpu_custom_call.1} parent=1 // pred_check
      _
    $region15: #{tpu_custom_call.1} parent=1 // pred_check_branch
      %34 = sbr.rel (0) target = $region17
    $region16: #{tpu_custom_call.1} parent=1 // pred_region
      %s36 = ssub.s32 12288, 12288
      %37 = vsyncadd [#allocation6], %s36
      %s38 = sshll.u32 [#allocation5], 4
      %s39 = int_to_ptr.vmem [resolvable:$true] %s38
      %44 = dma.hbm_to_vmem [thread:$0]  %s3, 12288, %s39, [#allocation6], 192, 192, 12
    $region17: #{tpu_custom_call.1} parent=1 // pred_fallthru
      _
    // Predicated region
    $region18: #{tpu_custom_call.1} parent=1 // pred_check
      _
    $region19: #{tpu_custom_call.1} parent=1 // pred_check_branch
      %46 = sbr.rel (0) target = $region21
    $region20: #{tpu_custom_call.1} parent=1 // pred_region
      _
    $region21: #{tpu_custom_call.1} parent=1 // pred_fallthru
      _
    // Predicated region
    $region22: #{tpu_custom_call.1} parent=1 // pred_check
      _
    $region23: #{tpu_custom_call.1} parent=1 // pred_check_branch
      %48 = sbr.rel (0) target = $region25
    $region24: #{tpu_custom_call.1} parent=1 // pred_region
      _
    $region25: #{tpu_custom_call.1} parent=1 // pred_fallthru
      _
    // Predicated region
    $region26: #{tpu_custom_call.1} parent=1 // pred_check
      _
    $region27: #{tpu_custom_call.1} parent=1 // pred_check_branch
      %50 = sbr.rel (0) target = $region29
    $region28: #{tpu_custom_call.1} parent=1 // pred_region
      _
    $region29: #{tpu_custom_call.1} parent=1 // pred_fallthru
      _
    // Predicated region
    $region30: #{tpu_custom_call.1} parent=1 // pred_check
      _
    $region31: #{tpu_custom_call.1} parent=1 // pred_check_branch
      %52 = sbr.rel (0) target = $region33
    $region32: #{tpu_custom_call.1} parent=1 // pred_region
      _
    $region33: #{tpu_custom_call.1} parent=1 // pred_fallthru
      _
    // Predicated region
    $region34: #{tpu_custom_call.1} parent=1 // pred_check
      _
    $region35: #{tpu_custom_call.1} parent=1 // pred_check_branch
      %54 = sbr.rel (0) target = $region37
    $region36: #{tpu_custom_call.1} parent=1 // pred_region
      _
    $region37: #{tpu_custom_call.1} parent=1 // pred_fallthru
      _
    // Predicated region
    $region38: #{tpu_custom_call.1} parent=1 // pred_check
      _
    $region39: #{tpu_custom_call.1} parent=1 // pred_check_branch
      %56 = sbr.rel (0) target = $region41
    $region40: #{tpu_custom_call.1} parent=1 // pred_region
      %57 = dma.done [#allocation3], 4096
    $region41: #{tpu_custom_call.1} parent=1 // pred_fallthru
      _
    // Predicated region
    $region42: #{tpu_custom_call.1} parent=1 // pred_check
      _
    $region43: #{tpu_custom_call.1} parent=1 // pred_check_branch
      %59 = sbr.rel (0) target = $region45
    $region44: #{tpu_custom_call.1} parent=1 // pred_region
      %60 = dma.done [#allocation6], 12288
    $region45: #{tpu_custom_call.1} parent=1 // pred_fallthru
      _
    %v62 = vld [vmem:[%s0] sm:$0xff]
    %v63 = vpack.c.bf16 %v62, %v62
    %v64 = vld [vmem:[#allocation2] sm:$0xff]
    %v65 = vld [vmem:[#allocation2 + $0x8] sm:$0xff]
    %v66 = vld [vmem:[#allocation2 + $0x10] sm:$0xff]
    %v67 = vld [vmem:[#allocation2 + $0x18] sm:$0xff]
    %v68 = vld [vmem:[#allocation2 + $0x20] sm:$0xff]
    %v69 = vld [vmem:[#allocation2 + $0x28] sm:$0xff]
    %v70 = vld [vmem:[#allocation2 + $0x30] sm:$0xff]
    %v71 = vld [vmem:[#allocation2 + $0x38] sm:$0xff]
    %v72 = vld [vmem:[#allocation2 + $0x40] sm:$0xff]
    %v73 = vld [vmem:[#allocation2 + $0x48] sm:$0xff]
    %v74 = vld [vmem:[#allocation2 + $0x50] sm:$0xff]
    %v75 = vld [vmem:[#allocation2 + $0x58] sm:$0xff]
    %v76 = vld [vmem:[#allocation2 + $0x60] sm:$0xff]
    %v77 = vld [vmem:[#allocation2 + $0x68] sm:$0xff]
    %v78 = vld [vmem:[#allocation2 + $0x70] sm:$0xff]
    %v79 = vld [vmem:[#allocation2 + $0x78] sm:$0xff]
    %v80 = vld [vmem:[#allocation2 + $0x80] sm:$0xff]
    %v81 = vld [vmem:[#allocation2 + $0x88] sm:$0xff]
    %v82 = vld [vmem:[#allocation2 + $0x90] sm:$0xff]
    %v83 = vld [vmem:[#allocation2 + $0x98] sm:$0xff]
    %v84 = vld [vmem:[#allocation2 + $0xa0] sm:$0xff]
    %v85 = vld [vmem:[#allocation2 + $0xa8] sm:$0xff]
    %v86 = vld [vmem:[#allocation2 + $0xb0] sm:$0xff]
    %v87 = vld [vmem:[#allocation2 + $0xb8] sm:$0xff]
    %v88 = vld [vmem:[#allocation2 + $0xc0] sm:$0xff]
    %v89 = vld [vmem:[#allocation2 + $0xc8] sm:$0xff]
    %v90 = vld [vmem:[#allocation2 + $0xd0] sm:$0xff]
    %v91 = vld [vmem:[#allocation2 + $0xd8] sm:$0xff]
    %v92 = vld [vmem:[#allocation2 + $0xe0] sm:$0xff]
    %v93 = vld [vmem:[#allocation2 + $0xe8] sm:$0xff]
    %v94 = vld [vmem:[#allocation2 + $0xf0] sm:$0xff]
    %v95 = vld [vmem:[#allocation2 + $0xf8] sm:$0xff]
    %v96 = vld [vmem:[%s2] sm:$0xf]
    %v98 = vlaneseq
    %v99 = vshrl.u32 %v98, 7
    %v100 = vsub.s32 0, %v99
    %v101 = vrot.slane %v96, %v100
    %v102 = vlaneseq
    %v103 = vshrl.u32 %v102, 7
    %v104 = vsub.s32 1, %v103
    %v105 = vrot.slane %v96, %v104
    %v106 = vlaneseq
    %v107 = vshrl.u32 %v106, 7
    %v108 = vsub.s32 2, %v107
    %v109 = vrot.slane %v96, %v108
    %v110 = vlaneseq
    %v111 = vshrl.u32 %v110, 7
    %v112 = vsub.s32 3, %v111
    %v113 = vrot.slane %v96, %v112
    %v150 = vunpack.c.l.b16 %v64
    %v151 = vunpack.c.h.b16 %v64
    %v152 = vunpack.c.l.b16 %v65
    %v153 = vunpack.c.h.b16 %v65
    %v154 = vunpack.c.l.b16 %v66
    %v155 = vunpack.c.h.b16 %v66
    %v156 = vunpack.c.l.b16 %v67
    %v157 = vunpack.c.h.b16 %v67
    %v158 = vunpack.c.l.b16 %v68
    %v159 = vunpack.c.h.b16 %v68
    %v160 = vunpack.c.l.b16 %v69
    %v161 = vunpack.c.h.b16 %v69
    %v162 = vunpack.c.l.b16 %v70
    %v163 = vunpack.c.h.b16 %v70
    %v164 = vunpack.c.l.b16 %v71
    %v165 = vunpack.c.h.b16 %v71
    %v166 = vunpack.c.l.b16 %v72
    %v167 = vunpack.c.h.b16 %v72
    %v168 = vunpack.c.l.b16 %v73
    %v169 = vunpack.c.h.b16 %v73
    %v170 = vunpack.c.l.b16 %v74
    %v171 = vunpack.c.h.b16 %v74
    %v172 = vunpack.c.l.b16 %v75
    %v173 = vunpack.c.h.b16 %v75
    %v174 = vunpack.c.l.b16 %v76
    %v175 = vunpack.c.h.b16 %v76
    %v176 = vunpack.c.l.b16 %v77
    %v177 = vunpack.c.h.b16 %v77
    %v178 = vunpack.c.l.b16 %v78
    %v179 = vunpack.c.h.b16 %v78
    %v180 = vunpack.c.l.b16 %v79
    %v181 = vunpack.c.h.b16 %v79
    %v182 = vunpack.c.l.b16 %v80
    %v183 = vunpack.c.h.b16 %v80
    %v184 = vunpack.c.l.b16 %v81
    %v185 = vunpack.c.h.b16 %v81
    %v186 = vunpack.c.l.b16 %v82
    %v187 = vunpack.c.h.b16 %v82
    %v188 = vunpack.c.l.b16 %v83
    %v189 = vunpack.c.h.b16 %v83
    %v190 = vunpack.c.l.b16 %v84
    %v191 = vunpack.c.h.b16 %v84
    %v192 = vunpack.c.l.b16 %v85
    %v193 = vunpack.c.h.b16 %v85
    %v194 = vunpack.c.l.b16 %v86
    %v195 = vunpack.c.h.b16 %v86
    %v196 = vunpack.c.l.b16 %v87
    %v197 = vunpack.c.h.b16 %v87
    %v198 = vunpack.c.l.b16 %v88
    %v199 = vunpack.c.h.b16 %v88
    %v200 = vunpack.c.l.b16 %v89
    %v201 = vunpack.c.h.b16 %v89
    %v202 = vunpack.c.l.b16 %v90
    %v203 = vunpack.c.h.b16 %v90
    %v204 = vunpack.c.l.b16 %v91
    %v205 = vunpack.c.h.b16 %v91
    %v206 = vunpack.c.l.b16 %v92
    %v207 = vunpack.c.h.b16 %v92
    %v208 = vunpack.c.l.b16 %v93
    %v209 = vunpack.c.h.b16 %v93
    %v210 = vunpack.c.l.b16 %v94
    %v211 = vunpack.c.h.b16 %v94
    %v212 = vunpack.c.l.b16 %v95
    %v213 = vunpack.c.h.b16 %v95
    %v214 = vpack.c.b16 %v154, %v150
    %v215 = vpack.c.b16 %v155, %v151
    %v216 = vpack.c.b16 %v156, %v152
    %v217 = vpack.c.b16 %v157, %v153
    %v218 = vpack.c.b16 %v162, %v158
    %v219 = vpack.c.b16 %v163, %v159
    %v220 = vpack.c.b16 %v164, %v160
    %v221 = vpack.c.b16 %v165, %v161
    %v222 = vpack.c.b16 %v170, %v166
    %v223 = vpack.c.b16 %v171, %v167
    %v224 = vpack.c.b16 %v172, %v168
    %v225 = vpack.c.b16 %v173, %v169
    %v226 = vpack.c.b16 %v178, %v174
    %v227 = vpack.c.b16 %v179, %v175
    %v228 = vpack.c.b16 %v180, %v176
    %v229 = vpack.c.b16 %v181, %v177
    %v230 = vpack.c.b16 %v186, %v182
    %v231 = vpack.c.b16 %v187, %v183
    %v232 = vpack.c.b16 %v188, %v184
    %v233 = vpack.c.b16 %v189, %v185
    %v234 = vpack.c.b16 %v194, %v190
    %v235 = vpack.c.b16 %v195, %v191
    %v236 = vpack.c.b16 %v196, %v192
    %v237 = vpack.c.b16 %v197, %v193
    %v238 = vpack.c.b16 %v202, %v198
    %v239 = vpack.c.b16 %v203, %v199
    %v240 = vpack.c.b16 %v204, %v200
    %v241 = vpack.c.b16 %v205, %v201
    %v242 = vpack.c.b16 %v210, %v206
    %v243 = vpack.c.b16 %v211, %v207
    %v244 = vpack.c.b16 %v212, %v208
    %v245 = vpack.c.b16 %v213, %v209
    %278 = vmatprep.subr.bf16.mxu0 %v243
    %279 = vmatpush1.bf16.msra.mxu0 %v242
    %280 = vmatprep.subr.bf16.mxu0 %v239
    %281 = vmatpush1.bf16.msra.mxu0 %v238
    %282 = vmatprep.subr.bf16.mxu0 %v235
    %283 = vmatpush1.bf16.msra.mxu0 %v234
    %284 = vmatprep.subr.bf16.mxu0 %v231
    %285 = vmatpush1.bf16.msra.mxu0 %v230
    %286 = vmatprep.subr.bf16.mxu0 %v227
    %287 = vmatpush1.bf16.msra.mxu0 %v226
    %288 = vmatprep.subr.bf16.mxu0 %v223
    %289 = vmatpush1.bf16.msra.mxu0 %v222
    %290 = vmatprep.subr.bf16.mxu0 %v219
    %291 = vmatpush1.bf16.msra.mxu0 %v218
    %292 = vmatprep.subr.bf16.mxu0 %v215
    %293 = vmatpush1.bf16.msra.mxu0 %v214
    %294 = vmatprep.subr.bf16.mxu0 0
    %295 = vmatpush2.bf16.msra.mxu0 0
    %296 = vmatprep.subr.bf16.mxu0 0
    %297 = vmatpush2.bf16.msra.mxu0 0
    %298 = vmatprep.subr.bf16.mxu0 0
    %299 = vmatpush2.bf16.msra.mxu0 0
    %300 = vmatprep.subr.bf16.mxu0 0
    %301 = vmatpush2.bf16.msra.mxu0 0
    %302 = vmatprep.subr.bf16.mxu0 0
    %303 = vmatpush2.bf16.msra.mxu0 0
    %304 = vmatprep.subr.bf16.mxu0 0
    %305 = vmatpush2.bf16.msra.mxu0 0
    %306 = vmatprep.subr.bf16.mxu0 0
    %307 = vmatpush2.bf16.msra.mxu0 0
    %308 = vmatprep.subr.bf16.mxu0 0
    %309 = vmatpush2.bf16.msra.mxu0 0
    %310 = vmatprep.mubr.bf16.mxu0 0
    %311 = vmatmul.mubr.bf16.gmra.mxu0 %v63
    %v312 = vpop.f32.mrf.mxu0
    %v313 = vadd.f32 %v101, %v312
    %v314 = vpop.f32.mrf.mxu0
    %v315 = vadd.f32 %v105, %v314
    %v316 = vpop.f32.mrf.mxu0
    %v317 = vpop.f32.mrf.mxu0
    %318 = vdwg.mxu0
    %319 = vmatprep.subr.bf16.mxu0 %v245
    %320 = vmatpush1.bf16.msra.mxu0 %v244
    %321 = vmatprep.subr.bf16.mxu0 %v241
    %322 = vmatpush1.bf16.msra.mxu0 %v240
    %323 = vmatprep.subr.bf16.mxu0 %v237
    %324 = vmatpush1.bf16.msra.mxu0 %v236
    %325 = vmatprep.subr.bf16.mxu0 %v233
    %326 = vmatpush1.bf16.msra.mxu0 %v232
    %327 = vmatprep.subr.bf16.mxu0 %v229
    %328 = vmatpush1.bf16.msra.mxu0 %v228
    %329 = vmatprep.subr.bf16.mxu0 %v225
    %330 = vmatpush1.bf16.msra.mxu0 %v224
    %331 = vmatprep.subr.bf16.mxu0 %v221
    %332 = vmatpush1.bf16.msra.mxu0 %v220
    %333 = vmatprep.subr.bf16.mxu0 %v217
    %334 = vmatpush1.bf16.msra.mxu0 %v216
    %335 = vmatprep.subr.bf16.mxu0 0
    %336 = vmatpush2.bf16.msra.mxu0 0
    %337 = vmatprep.subr.bf16.mxu0 0
    %338 = vmatpush2.bf16.msra.mxu0 0
    %339 = vmatprep.subr.bf16.mxu0 0
    %340 = vmatpush2.bf16.msra.mxu0 0
    %341 = vmatprep.subr.bf16.mxu0 0
    %342 = vmatpush2.bf16.msra.mxu0 0
    %343 = vmatprep.subr.bf16.mxu0 0
    %344 = vmatpush2.bf16.msra.mxu0 0
    %345 = vmatprep.subr.bf16.mxu0 0
    %346 = vmatpush2.bf16.msra.mxu0 0
    %347 = vmatprep.subr.bf16.mxu0 0
    %348 = vmatpush2.bf16.msra.mxu0 0
    %349 = vmatprep.subr.bf16.mxu0 0
    %350 = vmatpush2.bf16.msra.mxu0 0
    %351 = vmatprep.mubr.bf16.mxu0 0
    %352 = vmatmul.mubr.bf16.gmra.mxu0 %v63
    %v353 = vpop.f32.mrf.mxu0
    %v354 = vadd.f32 %v109, %v353
    %v355 = vpop.f32.mrf.mxu0
    %v356 = vadd.f32 %v113, %v355
    %v357 = vpop.f32.mrf.mxu0
    %v358 = vpop.f32.mrf.mxu0
    %359 = vdwg.mxu0
    %v360 = vmax.f32 %v313, 0.0
    %v361 = vmax.f32 %v315, 0.0
    %v362 = vmax.f32 %v354, 0.0
    %v363 = vmax.f32 %v356, 0.0
    %v364 = vpack.c.bf16 %v360, %v360
    %v365 = vpack.c.bf16 %v361, %v361
    %v366 = vpack.c.bf16 %v362, %v362
    %v367 = vpack.c.bf16 %v363, %v363
    %v368 = vld [vmem:[#allocation5] sm:$0xff]
    %v369 = vld [vmem:[#allocation5 + $0x8] sm:$0xf]
    %v370 = vld [vmem:[#allocation5 + $0xc] sm:$0xff]
    %v371 = vld [vmem:[#allocation5 + $0x14] sm:$0xf]
    %v372 = vld [vmem:[#allocation5 + $0x18] sm:$0xff]
    %v373 = vld [vmem:[#allocation5 + $0x20] sm:$0xf]
    %v374 = vld [vmem:[#allocation5 + $0x24] sm:$0xff]
    %v375 = vld [vmem:[#allocation5 + $0x2c] sm:$0xf]
    %v376 = vld [vmem:[#allocation5 + $0x30] sm:$0xff]
    %v377 = vld [vmem:[#allocation5 + $0x38] sm:$0xf]
    %v378 = vld [vmem:[#allocation5 + $0x3c] sm:$0xff]
    %v379 = vld [vmem:[#allocation5 + $0x44] sm:$0xf]
    %v380 = vld [vmem:[#allocation5 + $0x48] sm:$0xff]
    %v381 = vld [vmem:[#allocation5 + $0x50] sm:$0xf]
    %v382 = vld [vmem:[#allocation5 + $0x54] sm:$0xff]
    %v383 = vld [vmem:[#allocation5 + $0x5c] sm:$0xf]
    %v384 = vld [vmem:[#allocation5 + $0x60] sm:$0xff]
    %v385 = vld [vmem:[#allocation5 + $0x68] sm:$0xf]
    %v386 = vld [vmem:[#allocation5 + $0x6c] sm:$0xff]
    %v387 = vld [vmem:[#allocation5 + $0x74] sm:$0xf]
    %v388 = vld [vmem:[#allocation5 + $0x78] sm:$0xff]
    %v389 = vld [vmem:[#allocation5 + $0x80] sm:$0xf]
    %v390 = vld [vmem:[#allocation5 + $0x84] sm:$0xff]
    %v391 = vld [vmem:[#allocation5 + $0x8c] sm:$0xf]
    %v392 = vld [vmem:[#allocation5 + $0x90] sm:$0xff]
    %v393 = vld [vmem:[#allocation5 + $0x98] sm:$0xf]
    %v394 = vld [vmem:[#allocation5 + $0x9c] sm:$0xff]
    %v395 = vld [vmem:[#allocation5 + $0xa4] sm:$0xf]
    %v396 = vld [vmem:[#allocation5 + $0xa8] sm:$0xff]
    %v397 = vld [vmem:[#allocation5 + $0xb0] sm:$0xf]
    %v398 = vld [vmem:[#allocation5 + $0xb4] sm:$0xff]
    %v399 = vld [vmem:[#allocation5 + $0xbc] sm:$0xf]
    %v400 = vld [vmem:[#allocation5 + $0xc0] sm:$0xff]
    %v401 = vld [vmem:[#allocation5 + $0xc8] sm:$0xf]
    %v402 = vld [vmem:[#allocation5 + $0xcc] sm:$0xff]
    %v403 = vld [vmem:[#allocation5 + $0xd4] sm:$0xf]
    %v404 = vld [vmem:[#allocation5 + $0xd8] sm:$0xff]
    %v405 = vld [vmem:[#allocation5 + $0xe0] sm:$0xf]
    %v406 = vld [vmem:[#allocation5 + $0xe4] sm:$0xff]
    %v407 = vld [vmem:[#allocation5 + $0xec] sm:$0xf]
    %v408 = vld [vmem:[#allocation5 + $0xf0] sm:$0xff]
    %v409 = vld [vmem:[#allocation5 + $0xf8] sm:$0xf]
    %v410 = vld [vmem:[#allocation5 + $0xfc] sm:$0xff]
    %v411 = vld [vmem:[#allocation5 + $0x104] sm:$0xf]
    %v412 = vld [vmem:[#allocation5 + $0x108] sm:$0xff]
    %v413 = vld [vmem:[#allocation5 + $0x110] sm:$0xf]
    %v414 = vld [vmem:[#allocation5 + $0x114] sm:$0xff]
    %v415 = vld [vmem:[#allocation5 + $0x11c] sm:$0xf]
    %v416 = vld [vmem:[#allocation5 + $0x120] sm:$0xff]
    %v417 = vld [vmem:[#allocation5 + $0x128] sm:$0xf]
    %v418 = vld [vmem:[#allocation5 + $0x12c] sm:$0xff]
    %v419 = vld [vmem:[#allocation5 + $0x134] sm:$0xf]
    %v420 = vld [vmem:[#allocation5 + $0x138] sm:$0xff]
    %v421 = vld [vmem:[#allocation5 + $0x140] sm:$0xf]
    %v422 = vld [vmem:[#allocation5 + $0x144] sm:$0xff]
    %v423 = vld [vmem:[#allocation5 + $0x14c] sm:$0xf]
    %v424 = vld [vmem:[#allocation5 + $0x150] sm:$0xff]
    %v425 = vld [vmem:[#allocation5 + $0x158] sm:$0xf]
    %v426 = vld [vmem:[#allocation5 + $0x15c] sm:$0xff]
    %v427 = vld [vmem:[#allocation5 + $0x164] sm:$0xf]
    %v428 = vld [vmem:[#allocation5 + $0x168] sm:$0xff]
    %v429 = vld [vmem:[#allocation5 + $0x170] sm:$0xf]
    %v430 = vld [vmem:[#allocation5 + $0x174] sm:$0xff]
    %v431 = vld [vmem:[#allocation5 + $0x17c] sm:$0xf]
    %v432 = vld [vmem:[#allocation5 + $0x180] sm:$0xff]
    %v433 = vld [vmem:[#allocation5 + $0x188] sm:$0xf]
    %v434 = vld [vmem:[#allocation5 + $0x18c] sm:$0xff]
    %v435 = vld [vmem:[#allocation5 + $0x194] sm:$0xf]
    %v436 = vld [vmem:[#allocation5 + $0x198] sm:$0xff]
    %v437 = vld [vmem:[#allocation5 + $0x1a0] sm:$0xf]
    %v438 = vld [vmem:[#allocation5 + $0x1a4] sm:$0xff]
    %v439 = vld [vmem:[#allocation5 + $0x1ac] sm:$0xf]
    %v440 = vld [vmem:[#allocation5 + $0x1b0] sm:$0xff]
    %v441 = vld [vmem:[#allocation5 + $0x1b8] sm:$0xf]
    %v442 = vld [vmem:[#allocation5 + $0x1bc] sm:$0xff]
    %v443 = vld [vmem:[#allocation5 + $0x1c4] sm:$0xf]
    %v444 = vld [vmem:[#allocation5 + $0x1c8] sm:$0xff]
    %v445 = vld [vmem:[#allocation5 + $0x1d0] sm:$0xf]
    %v446 = vld [vmem:[#allocation5 + $0x1d4] sm:$0xff]
    %v447 = vld [vmem:[#allocation5 + $0x1dc] sm:$0xf]
    %v448 = vld [vmem:[#allocation5 + $0x1e0] sm:$0xff]
    %v449 = vld [vmem:[#allocation5 + $0x1e8] sm:$0xf]
    %v450 = vld [vmem:[#allocation5 + $0x1ec] sm:$0xff]
    %v451 = vld [vmem:[#allocation5 + $0x1f4] sm:$0xf]
    %v452 = vld [vmem:[#allocation5 + $0x1f8] sm:$0xff]
    %v453 = vld [vmem:[#allocation5 + $0x200] sm:$0xf]
    %v454 = vld [vmem:[#allocation5 + $0x204] sm:$0xff]
    %v455 = vld [vmem:[#allocation5 + $0x20c] sm:$0xf]
    %v456 = vld [vmem:[#allocation5 + $0x210] sm:$0xff]
    %v457 = vld [vmem:[#allocation5 + $0x218] sm:$0xf]
    %v458 = vld [vmem:[#allocation5 + $0x21c] sm:$0xff]
    %v459 = vld [vmem:[#allocation5 + $0x224] sm:$0xf]
    %v460 = vld [vmem:[#allocation5 + $0x228] sm:$0xff]
    %v461 = vld [vmem:[#allocation5 + $0x230] sm:$0xf]
    %v462 = vld [vmem:[#allocation5 + $0x234] sm:$0xff]
    %v463 = vld [vmem:[#allocation5 + $0x23c] sm:$0xf]
    %v464 = vld [vmem:[#allocation5 + $0x240] sm:$0xff]
    %v465 = vld [vmem:[#allocation5 + $0x248] sm:$0xf]
    %v466 = vld [vmem:[#allocation5 + $0x24c] sm:$0xff]
    %v467 = vld [vmem:[#allocation5 + $0x254] sm:$0xf]
    %v468 = vld [vmem:[#allocation5 + $0x258] sm:$0xff]
    %v469 = vld [vmem:[#allocation5 + $0x260] sm:$0xf]
    %v470 = vld [vmem:[#allocation5 + $0x264] sm:$0xff]
    %v471 = vld [vmem:[#allocation5 + $0x26c] sm:$0xf]
    %v472 = vld [vmem:[#allocation5 + $0x270] sm:$0xff]
    %v473 = vld [vmem:[#allocation5 + $0x278] sm:$0xf]
    %v474 = vld [vmem:[#allocation5 + $0x27c] sm:$0xff]
    %v475 = vld [vmem:[#allocation5 + $0x284] sm:$0xf]
    %v476 = vld [vmem:[#allocation5 + $0x288] sm:$0xff]
    %v477 = vld [vmem:[#allocation5 + $0x290] sm:$0xf]
    %v478 = vld [vmem:[#allocation5 + $0x294] sm:$0xff]
    %v479 = vld [vmem:[#allocation5 + $0x29c] sm:$0xf]
    %v480 = vld [vmem:[#allocation5 + $0x2a0] sm:$0xff]
    %v481 = vld [vmem:[#allocation5 + $0x2a8] sm:$0xf]
    %v482 = vld [vmem:[#allocation5 + $0x2ac] sm:$0xff]
    %v483 = vld [vmem:[#allocation5 + $0x2b4] sm:$0xf]
    %v484 = vld [vmem:[#allocation5 + $0x2b8] sm:$0xff]
    %v485 = vld [vmem:[#allocation5 + $0x2c0] sm:$0xf]
    %v486 = vld [vmem:[#allocation5 + $0x2c4] sm:$0xff]
    %v487 = vld [vmem:[#allocation5 + $0x2cc] sm:$0xf]
    %v488 = vld [vmem:[#allocation5 + $0x2d0] sm:$0xff]
    %v489 = vld [vmem:[#allocation5 + $0x2d8] sm:$0xf]
    %v490 = vld [vmem:[#allocation5 + $0x2dc] sm:$0xff]
    %v491 = vld [vmem:[#allocation5 + $0x2e4] sm:$0xf]
    %v492 = vld [vmem:[#allocation5 + $0x2e8] sm:$0xff]
    %v493 = vld [vmem:[#allocation5 + $0x2f0] sm:$0xf]
    %v494 = vld [vmem:[#allocation5 + $0x2f4] sm:$0xff]
    %v495 = vld [vmem:[#allocation5 + $0x2fc] sm:$0xf]
    %v496 = vld [vmem:[%s4] sm:$0x7]
    %v498 = vlaneseq
    %v499 = vshrl.u32 %v498, 7
    %v500 = vsub.s32 0, %v499
    %v501 = vrot.slane %v496, %v500
    %v502 = vlaneseq
    %v503 = vshrl.u32 %v502, 7
    %v504 = vsub.s32 1, %v503
    %v505 = vrot.slane %v496, %v504
    %v506 = vlaneseq
    %v507 = vshrl.u32 %v506, 7
    %v508 = vsub.s32 2, %v507
    %v509 = vrot.slane %v496, %v508
    %v641 = vunpack.c.l.b16 %v368
    %v642 = vunpack.c.h.b16 %v368
    %v643 = vunpack.c.l.b16 %v369
    %v644 = vunpack.c.l.b16 %v370
    %v645 = vunpack.c.h.b16 %v370
    %v646 = vunpack.c.l.b16 %v371
    %v647 = vunpack.c.l.b16 %v372
    %v648 = vunpack.c.h.b16 %v372
    %v649 = vunpack.c.l.b16 %v373
    %v650 = vunpack.c.l.b16 %v374
    %v651 = vunpack.c.h.b16 %v374
    %v652 = vunpack.c.l.b16 %v375
    %v653 = vunpack.c.l.b16 %v376
    %v654 = vunpack.c.h.b16 %v376
    %v655 = vunpack.c.l.b16 %v377
    %v656 = vunpack.c.l.b16 %v378
    %v657 = vunpack.c.h.b16 %v378
    %v658 = vunpack.c.l.b16 %v379
    %v659 = vunpack.c.l.b16 %v380
    %v660 = vunpack.c.h.b16 %v380
    %v661 = vunpack.c.l.b16 %v381
    %v662 = vunpack.c.l.b16 %v382
    %v663 = vunpack.c.h.b16 %v382
    %v664 = vunpack.c.l.b16 %v383
    %v665 = vunpack.c.l.b16 %v384
    %v666 = vunpack.c.h.b16 %v384
    %v667 = vunpack.c.l.b16 %v385
    %v668 = vunpack.c.l.b16 %v386
    %v669 = vunpack.c.h.b16 %v386
    %v670 = vunpack.c.l.b16 %v387
    %v671 = vunpack.c.l.b16 %v388
    %v672 = vunpack.c.h.b16 %v388
    %v673 = vunpack.c.l.b16 %v389
    %v674 = vunpack.c.l.b16 %v390
    %v675 = vunpack.c.h.b16 %v390
    %v676 = vunpack.c.l.b16 %v391
    %v677 = vunpack.c.l.b16 %v392
    %v678 = vunpack.c.h.b16 %v392
    %v679 = vunpack.c.l.b16 %v393
    %v680 = vunpack.c.l.b16 %v394
    %v681 = vunpack.c.h.b16 %v394
    %v682 = vunpack.c.l.b16 %v395
    %v683 = vunpack.c.l.b16 %v396
    %v684 = vunpack.c.h.b16 %v396
    %v685 = vunpack.c.l.b16 %v397
    %v686 = vunpack.c.l.b16 %v398
    %v687 = vunpack.c.h.b16 %v398
    %v688 = vunpack.c.l.b16 %v399
    %v689 = vunpack.c.l.b16 %v400
    %v690 = vunpack.c.h.b16 %v400
    %v691 = vunpack.c.l.b16 %v401
    %v692 = vunpack.c.l.b16 %v402
    %v693 = vunpack.c.h.b16 %v402
    %v694 = vunpack.c.l.b16 %v403
    %v695 = vunpack.c.l.b16 %v404
    %v696 = vunpack.c.h.b16 %v404
    %v697 = vunpack.c.l.b16 %v405
    %v698 = vunpack.c.l.b16 %v406
    %v699 = vunpack.c.h.b16 %v406
    %v700 = vunpack.c.l.b16 %v407
    %v701 = vunpack.c.l.b16 %v408
    %v702 = vunpack.c.h.b16 %v408
    %v703 = vunpack.c.l.b16 %v409
    %v704 = vunpack.c.l.b16 %v410
    %v705 = vunpack.c.h.b16 %v410
    %v706 = vunpack.c.l.b16 %v411
    %v707 = vunpack.c.l.b16 %v412
    %v708 = vunpack.c.h.b16 %v412
    %v709 = vunpack.c.l.b16 %v413
    %v710 = vunpack.c.l.b16 %v414
    %v711 = vunpack.c.h.b16 %v414
    %v712 = vunpack.c.l.b16 %v415
    %v713 = vunpack.c.l.b16 %v416
    %v714 = vunpack.c.h.b16 %v416
    %v715 = vunpack.c.l.b16 %v417
    %v716 = vunpack.c.l.b16 %v418
    %v717 = vunpack.c.h.b16 %v418
    %v718 = vunpack.c.l.b16 %v419
    %v719 = vunpack.c.l.b16 %v420
    %v720 = vunpack.c.h.b16 %v420
    %v721 = vunpack.c.l.b16 %v421
    %v722 = vunpack.c.l.b16 %v422
    %v723 = vunpack.c.h.b16 %v422
    %v724 = vunpack.c.l.b16 %v423
    %v725 = vunpack.c.l.b16 %v424
    %v726 = vunpack.c.h.b16 %v424
    %v727 = vunpack.c.l.b16 %v425
    %v728 = vunpack.c.l.b16 %v426
    %v729 = vunpack.c.h.b16 %v426
    %v730 = vunpack.c.l.b16 %v427
    %v731 = vunpack.c.l.b16 %v428
    %v732 = vunpack.c.h.b16 %v428
    %v733 = vunpack.c.l.b16 %v429
    %v734 = vunpack.c.l.b16 %v430
    %v735 = vunpack.c.h.b16 %v430
    %v736 = vunpack.c.l.b16 %v431
    %v737 = vunpack.c.l.b16 %v432
    %v738 = vunpack.c.h.b16 %v432
    %v739 = vunpack.c.l.b16 %v433
    %v740 = vunpack.c.l.b16 %v434
    %v741 = vunpack.c.h.b16 %v434
    %v742 = vunpack.c.l.b16 %v435
    %v743 = vunpack.c.l.b16 %v436
    %v744 = vunpack.c.h.b16 %v436
    %v745 = vunpack.c.l.b16 %v437
    %v746 = vunpack.c.l.b16 %v438
    %v747 = vunpack.c.h.b16 %v438
    %v748 = vunpack.c.l.b16 %v439
    %v749 = vunpack.c.l.b16 %v440
    %v750 = vunpack.c.h.b16 %v440
    %v751 = vunpack.c.l.b16 %v441
    %v752 = vunpack.c.l.b16 %v442
    %v753 = vunpack.c.h.b16 %v442
    %v754 = vunpack.c.l.b16 %v443
    %v755 = vunpack.c.l.b16 %v444
    %v756 = vunpack.c.h.b16 %v444
    %v757 = vunpack.c.l.b16 %v445
    %v758 = vunpack.c.l.b16 %v446
    %v759 = vunpack.c.h.b16 %v446
    %v760 = vunpack.c.l.b16 %v447
    %v761 = vunpack.c.l.b16 %v448
    %v762 = vunpack.c.h.b16 %v448
    %v763 = vunpack.c.l.b16 %v449
    %v764 = vunpack.c.l.b16 %v450
    %v765 = vunpack.c.h.b16 %v450
    %v766 = vunpack.c.l.b16 %v451
    %v767 = vunpack.c.l.b16 %v452
    %v768 = vunpack.c.h.b16 %v452
    %v769 = vunpack.c.l.b16 %v453
    %v770 = vunpack.c.l.b16 %v454
    %v771 = vunpack.c.h.b16 %v454
    %v772 = vunpack.c.l.b16 %v455
    %v773 = vunpack.c.l.b16 %v456
    %v774 = vunpack.c.h.b16 %v456
    %v775 = vunpack.c.l.b16 %v457
    %v776 = vunpack.c.l.b16 %v458
    %v777 = vunpack.c.h.b16 %v458
    %v778 = vunpack.c.l.b16 %v459
    %v779 = vunpack.c.l.b16 %v460
    %v780 = vunpack.c.h.b16 %v460
    %v781 = vunpack.c.l.b16 %v461
    %v782 = vunpack.c.l.b16 %v462
    %v783 = vunpack.c.h.b16 %v462
    %v784 = vunpack.c.l.b16 %v463
    %v785 = vunpack.c.l.b16 %v464
    %v786 = vunpack.c.h.b16 %v464
    %v787 = vunpack.c.l.b16 %v465
    %v788 = vunpack.c.l.b16 %v466
    %v789 = vunpack.c.h.b16 %v466
    %v790 = vunpack.c.l.b16 %v467
    %v791 = vunpack.c.l.b16 %v468
    %v792 = vunpack.c.h.b16 %v468
    %v793 = vunpack.c.l.b16 %v469
    %v794 = vunpack.c.l.b16 %v470
    %v795 = vunpack.c.h.b16 %v470
    %v796 = vunpack.c.l.b16 %v471
    %v797 = vunpack.c.l.b16 %v472
    %v798 = vunpack.c.h.b16 %v472
    %v799 = vunpack.c.l.b16 %v473
    %v800 = vunpack.c.l.b16 %v474
    %v801 = vunpack.c.h.b16 %v474
    %v802 = vunpack.c.l.b16 %v475
    %v803 = vunpack.c.l.b16 %v476
    %v804 = vunpack.c.h.b16 %v476
    %v805 = vunpack.c.l.b16 %v477
    %v806 = vunpack.c.l.b16 %v478
    %v807 = vunpack.c.h.b16 %v478
    %v808 = vunpack.c.l.b16 %v479
    %v809 = vunpack.c.l.b16 %v480
    %v810 = vunpack.c.h.b16 %v480
    %v811 = vunpack.c.l.b16 %v481
    %v812 = vunpack.c.l.b16 %v482
    %v813 = vunpack.c.h.b16 %v482
    %v814 = vunpack.c.l.b16 %v483
    %v815 = vunpack.c.l.b16 %v484
    %v816 = vunpack.c.h.b16 %v484
    %v817 = vunpack.c.l.b16 %v485
    %v818 = vunpack.c.l.b16 %v486
    %v819 = vunpack.c.h.b16 %v486
    %v820 = vunpack.c.l.b16 %v487
    %v821 = vunpack.c.l.b16 %v488
    %v822 = vunpack.c.h.b16 %v488
    %v823 = vunpack.c.l.b16 %v489
    %v824 = vunpack.c.l.b16 %v490
    %v825 = vunpack.c.h.b16 %v490
    %v826 = vunpack.c.l.b16 %v491
    %v827 = vunpack.c.l.b16 %v492
    %v828 = vunpack.c.h.b16 %v492
    %v829 = vunpack.c.l.b16 %v493
    %v830 = vunpack.c.l.b16 %v494
    %v831 = vunpack.c.h.b16 %v494
    %v832 = vunpack.c.l.b16 %v495
    %v833 = vpack.c.b16 %v644, %v641
    %v834 = vpack.c.b16 %v645, %v642
    %v835 = vpack.c.b16 %v646, %v643
    %v836 = vpack.c.b16 %v650, %v647
    %v837 = vpack.c.b16 %v651, %v648
    %v838 = vpack.c.b16 %v652, %v649
    %v839 = vpack.c.b16 %v656, %v653
    %v840 = vpack.c.b16 %v657, %v654
    %v841 = vpack.c.b16 %v658, %v655
    %v842 = vpack.c.b16 %v662, %v659
    %v843 = vpack.c.b16 %v663, %v660
    %v844 = vpack.c.b16 %v664, %v661
    %v845 = vpack.c.b16 %v668, %v665
    %v846 = vpack.c.b16 %v669, %v666
    %v847 = vpack.c.b16 %v670, %v667
    %v848 = vpack.c.b16 %v674, %v671
    %v849 = vpack.c.b16 %v675, %v672
    %v850 = vpack.c.b16 %v676, %v673
    %v851 = vpack.c.b16 %v680, %v677
    %v852 = vpack.c.b16 %v681, %v678
    %v853 = vpack.c.b16 %v682, %v679
    %v854 = vpack.c.b16 %v686, %v683
    %v855 = vpack.c.b16 %v687, %v684
    %v856 = vpack.c.b16 %v688, %v685
    %v857 = vpack.c.b16 %v692, %v689
    %v858 = vpack.c.b16 %v693, %v690
    %v859 = vpack.c.b16 %v694, %v691
    %v860 = vpack.c.b16 %v698, %v695
    %v861 = vpack.c.b16 %v699, %v696
    %v862 = vpack.c.b16 %v700, %v697
    %v863 = vpack.c.b16 %v704, %v701
    %v864 = vpack.c.b16 %v705, %v702
    %v865 = vpack.c.b16 %v706, %v703
    %v866 = vpack.c.b16 %v710, %v707
    %v867 = vpack.c.b16 %v711, %v708
    %v868 = vpack.c.b16 %v712, %v709
    %v869 = vpack.c.b16 %v716, %v713
    %v870 = vpack.c.b16 %v717, %v714
    %v871 = vpack.c.b16 %v718, %v715
    %v872 = vpack.c.b16 %v722, %v719
    %v873 = vpack.c.b16 %v723, %v720
    %v874 = vpack.c.b16 %v724, %v721
    %v875 = vpack.c.b16 %v728, %v725
    %v876 = vpack.c.b16 %v729, %v726
    %v877 = vpack.c.b16 %v730, %v727
    %v878 = vpack.c.b16 %v734, %v731
    %v879 = vpack.c.b16 %v735, %v732
    %v880 = vpack.c.b16 %v736, %v733
    %v881 = vpack.c.b16 %v740, %v737
    %v882 = vpack.c.b16 %v741, %v738
    %v883 = vpack.c.b16 %v742, %v739
    %v884 = vpack.c.b16 %v746, %v743
    %v885 = vpack.c.b16 %v747, %v744
    %v886 = vpack.c.b16 %v748, %v745
    %v887 = vpack.c.b16 %v752, %v749
    %v888 = vpack.c.b16 %v753, %v750
    %v889 = vpack.c.b16 %v754, %v751
    %v890 = vpack.c.b16 %v758, %v755
    %v891 = vpack.c.b16 %v759, %v756
    %v892 = vpack.c.b16 %v760, %v757
    %v893 = vpack.c.b16 %v764, %v761
    %v894 = vpack.c.b16 %v765, %v762
    %v895 = vpack.c.b16 %v766, %v763
    %v896 = vpack.c.b16 %v770, %v767
    %v897 = vpack.c.b16 %v771, %v768
    %v898 = vpack.c.b16 %v772, %v769
    %v899 = vpack.c.b16 %v776, %v773
    %v900 = vpack.c.b16 %v777, %v774
    %v901 = vpack.c.b16 %v778, %v775
    %v902 = vpack.c.b16 %v782, %v779
    %v903 = vpack.c.b16 %v783, %v780
    %v904 = vpack.c.b16 %v784, %v781
    %v905 = vpack.c.b16 %v788, %v785
    %v906 = vpack.c.b16 %v789, %v786
    %v907 = vpack.c.b16 %v790, %v787
    %v908 = vpack.c.b16 %v794, %v791
    %v909 = vpack.c.b16 %v795, %v792
    %v910 = vpack.c.b16 %v796, %v793
    %v911 = vpack.c.b16 %v800, %v797
    %v912 = vpack.c.b16 %v801, %v798
    %v913 = vpack.c.b16 %v802, %v799
    %v914 = vpack.c.b16 %v806, %v803
    %v915 = vpack.c.b16 %v807, %v804
    %v916 = vpack.c.b16 %v808, %v805
    %v917 = vpack.c.b16 %v812, %v809
    %v918 = vpack.c.b16 %v813, %v810
    %v919 = vpack.c.b16 %v814, %v811
    %v920 = vpack.c.b16 %v818, %v815
    %v921 = vpack.c.b16 %v819, %v816
    %v922 = vpack.c.b16 %v820, %v817
    %v923 = vpack.c.b16 %v824, %v821
    %v924 = vpack.c.b16 %v825, %v822
    %v925 = vpack.c.b16 %v826, %v823
    %v926 = vpack.c.b16 %v830, %v827
    %v927 = vpack.c.b16 %v831, %v828
    %v928 = vpack.c.b16 %v832, %v829
    %1025 = vmatprep.subr.bf16.mxu0 %v855
    %1026 = vmatpush1.bf16.msra.mxu0 %v854
    %1027 = vmatprep.subr.bf16.mxu0 %v852
    %1028 = vmatpush1.bf16.msra.mxu0 %v851
    %1029 = vmatprep.subr.bf16.mxu0 %v849
    %1030 = vmatpush1.bf16.msra.mxu0 %v848
    %1031 = vmatprep.subr.bf16.mxu0 %v846
    %1032 = vmatpush1.bf16.msra.mxu0 %v845
    %1033 = vmatprep.subr.bf16.mxu0 %v843
    %1034 = vmatpush1.bf16.msra.mxu0 %v842
    %1035 = vmatprep.subr.bf16.mxu0 %v840
    %1036 = vmatpush1.bf16.msra.mxu0 %v839
    %1037 = vmatprep.subr.bf16.mxu0 %v837
    %1038 = vmatpush1.bf16.msra.mxu0 %v836
    %1039 = vmatprep.subr.bf16.mxu0 %v834
    %1040 = vmatpush1.bf16.msra.mxu0 %v833
    %1041 = vmatprep.subr.bf16.mxu0 %v879
    %1042 = vmatpush2.bf16.msra.mxu0 %v878
    %1043 = vmatprep.subr.bf16.mxu0 %v876
    %1044 = vmatpush2.bf16.msra.mxu0 %v875
    %1045 = vmatprep.subr.bf16.mxu0 %v873
    %1046 = vmatpush2.bf16.msra.mxu0 %v872
    %1047 = vmatprep.subr.bf16.mxu0 %v870
    %1048 = vmatpush2.bf16.msra.mxu0 %v869
    %1049 = vmatprep.subr.bf16.mxu0 %v867
    %1050 = vmatpush2.bf16.msra.mxu0 %v866
    %1051 = vmatprep.subr.bf16.mxu0 %v864
    %1052 = vmatpush2.bf16.msra.mxu0 %v863
    %1053 = vmatprep.subr.bf16.mxu0 %v861
    %1054 = vmatpush2.bf16.msra.mxu0 %v860
    %1055 = vmatprep.subr.bf16.mxu0 %v858
    %1056 = vmatpush2.bf16.msra.mxu0 %v857
    %1057 = vmatprep.mubr.bf16.mxu0 %v365
    %1058 = vmatmul.mubr.bf16.gmra.mxu0 %v364
    %v1059 = vpop.f32.mrf.mxu0
    %v1060 = vadd.f32 %v501, %v1059
    %v1061 = vpop.f32.mrf.mxu0
    %v1062 = vadd.f32 %v505, %v1061
    %v1063 = vpop.f32.mrf.mxu0
    %v1064 = vpop.f32.mrf.mxu0
    %1065 = vdwg.mxu0
    %1066 = vmatprep.subr.bf16.mxu0 %v903
    %1067 = vmatpush1.bf16.msra.mxu0 %v902
    %1068 = vmatprep.subr.bf16.mxu0 %v900
    %1069 = vmatpush1.bf16.msra.mxu0 %v899
    %1070 = vmatprep.subr.bf16.mxu0 %v897
    %1071 = vmatpush1.bf16.msra.mxu0 %v896
    %1072 = vmatprep.subr.bf16.mxu0 %v894
    %1073 = vmatpush1.bf16.msra.mxu0 %v893
    %1074 = vmatprep.subr.bf16.mxu0 %v891
    %1075 = vmatpush1.bf16.msra.mxu0 %v890
    %1076 = vmatprep.subr.bf16.mxu0 %v888
    %1077 = vmatpush1.bf16.msra.mxu0 %v887
    %1078 = vmatprep.subr.bf16.mxu0 %v885
    %1079 = vmatpush1.bf16.msra.mxu0 %v884
    %1080 = vmatprep.subr.bf16.mxu0 %v882
    %1081 = vmatpush1.bf16.msra.mxu0 %v881
    %1082 = vmatprep.subr.bf16.mxu0 %v927
    %1083 = vmatpush2.bf16.msra.mxu0 %v926
    %1084 = vmatprep.subr.bf16.mxu0 %v924
    %1085 = vmatpush2.bf16.msra.mxu0 %v923
    %1086 = vmatprep.subr.bf16.mxu0 %v921
    %1087 = vmatpush2.bf16.msra.mxu0 %v920
    %1088 = vmatprep.subr.bf16.mxu0 %v918
    %1089 = vmatpush2.bf16.msra.mxu0 %v917
    %1090 = vmatprep.subr.bf16.mxu0 %v915
    %1091 = vmatpush2.bf16.msra.mxu0 %v914
    %1092 = vmatprep.subr.bf16.mxu0 %v912
    %1093 = vmatpush2.bf16.msra.mxu0 %v911
    %1094 = vmatprep.subr.bf16.mxu0 %v909
    %1095 = vmatpush2.bf16.msra.mxu0 %v908
    %1096 = vmatprep.subr.bf16.mxu0 %v906
    %1097 = vmatpush2.bf16.msra.mxu0 %v905
    %1098 = vmatprep.mubr.bf16.mxu0 %v367
    %1099 = vmatmul.mubr.bf16.gmra.mxu0 %v366
    %v1100 = vpop.f32.mrf.mxu0
    %v1101 = vadd.f32 %v1060, %v1100
    %v1102 = vpop.f32.mrf.mxu0
    %v1103 = vadd.f32 %v1062, %v1102
    %v1104 = vpop.f32.mrf.mxu0
    %v1105 = vpop.f32.mrf.mxu0
    %1106 = vdwg.mxu0
    %1107 = vmatprep.subr.bf16.mxu0 0
    %1108 = vmatpush1.bf16.msra.mxu0 %v856
    %1109 = vmatprep.subr.bf16.mxu0 0
    %1110 = vmatpush1.bf16.msra.mxu0 %v853
    %1111 = vmatprep.subr.bf16.mxu0 0
    %1112 = vmatpush1.bf16.msra.mxu0 %v850
    %1113 = vmatprep.subr.bf16.mxu0 0
    %1114 = vmatpush1.bf16.msra.mxu0 %v847
    %1115 = vmatprep.subr.bf16.mxu0 0
    %1116 = vmatpush1.bf16.msra.mxu0 %v844
    %1117 = vmatprep.subr.bf16.mxu0 0
    %1118 = vmatpush1.bf16.msra.mxu0 %v841
    %1119 = vmatprep.subr.bf16.mxu0 0
    %1120 = vmatpush1.bf16.msra.mxu0 %v838
    %1121 = vmatprep.subr.bf16.mxu0 0
    %1122 = vmatpush1.bf16.msra.mxu0 %v835
    %1123 = vmatprep.subr.bf16.mxu0 0
    %1124 = vmatpush2.bf16.msra.mxu0 %v880
    %1125 = vmatprep.subr.bf16.mxu0 0
    %1126 = vmatpush2.bf16.msra.mxu0 %v877
    %1127 = vmatprep.subr.bf16.mxu0 0
    %1128 = vmatpush2.bf16.msra.mxu0 %v874
    %1129 = vmatprep.subr.bf16.mxu0 0
    %1130 = vmatpush2.bf16.msra.mxu0 %v871
    %1131 = vmatprep.subr.bf16.mxu0 0
    %1132 = vmatpush2.bf16.msra.mxu0 %v868
    %1133 = vmatprep.subr.bf16.mxu0 0
    %1134 = vmatpush2.bf16.msra.mxu0 %v865
    %1135 = vmatprep.subr.bf16.mxu0 0
    %1136 = vmatpush2.bf16.msra.mxu0 %v862
    %1137 = vmatprep.subr.bf16.mxu0 0
    %1138 = vmatpush2.bf16.msra.mxu0 %v859
    %1139 = vmatprep.mubr.bf16.mxu0 %v365
    %1140 = vmatmul.mubr.bf16.gmra.mxu0 %v364
    %v1141 = vpop.f32.mrf.mxu0
    %v1142 = vadd.f32 %v509, %v1141
    %v1143 = vpop.f32.mrf.mxu0
    %v1144 = vpop.f32.mrf.mxu0
    %v1145 = vpop.f32.mrf.mxu0
    %1146 = vdwg.mxu0
    %1147 = vmatprep.subr.bf16.mxu0 0
    %1148 = vmatpush1.bf16.msra.mxu0 %v904
    %1149 = vmatprep.subr.bf16.mxu0 0
    %1150 = vmatpush1.bf16.msra.mxu0 %v901
    %1151 = vmatprep.subr.bf16.mxu0 0
    %1152 = vmatpush1.bf16.msra.mxu0 %v898
    %1153 = vmatprep.subr.bf16.mxu0 0
    %1154 = vmatpush1.bf16.msra.mxu0 %v895
    %1155 = vmatprep.subr.bf16.mxu0 0
    %1156 = vmatpush1.bf16.msra.mxu0 %v892
    %1157 = vmatprep.subr.bf16.mxu0 0
    %1158 = vmatpush1.bf16.msra.mxu0 %v889
    %1159 = vmatprep.subr.bf16.mxu0 0
    %1160 = vmatpush1.bf16.msra.mxu0 %v886
    %1161 = vmatprep.subr.bf16.mxu0 0
    %1162 = vmatpush1.bf16.msra.mxu0 %v883
    %1163 = vmatprep.subr.bf16.mxu0 0
    %1164 = vmatpush2.bf16.msra.mxu0 %v928
    %1165 = vmatprep.subr.bf16.mxu0 0
    %1166 = vmatpush2.bf16.msra.mxu0 %v925
    %1167 = vmatprep.subr.bf16.mxu0 0
    %1168 = vmatpush2.bf16.msra.mxu0 %v922
    %1169 = vmatprep.subr.bf16.mxu0 0
    %1170 = vmatpush2.bf16.msra.mxu0 %v919
    %1171 = vmatprep.subr.bf16.mxu0 0
    %1172 = vmatpush2.bf16.msra.mxu0 %v916
    %1173 = vmatprep.subr.bf16.mxu0 0
    %1174 = vmatpush2.bf16.msra.mxu0 %v913
    %1175 = vmatprep.subr.bf16.mxu0 0
    %1176 = vmatpush2.bf16.msra.mxu0 %v910
    %1177 = vmatprep.subr.bf16.mxu0 0
    %1178 = vmatpush2.bf16.msra.mxu0 %v907
    %1179 = vmatprep.mubr.bf16.mxu0 %v367
    %1180 = vmatmul.mubr.bf16.gmra.mxu0 %v366
    %v1181 = vpop.f32.mrf.mxu0
    %v1182 = vadd.f32 %v1142, %v1181
    %v1183 = vpop.f32.mrf.mxu0
    %v1184 = vpop.f32.mrf.mxu0
    %v1185 = vpop.f32.mrf.mxu0
    %1186 = vdwg.mxu0
    %v1187 = vmax.f32 %v1101, 0.0
    %v1188 = vmax.f32 %v1103, 0.0
    %v1189 = vmax.f32 %v1182, 0.0
    %v1190 = vpack.c.bf16 %v1187, %v1187
    %v1191 = vpack.c.bf16 %v1188, %v1188
    %v1192 = vpack.c.bf16 %v1189, %v1189
    %v1193 = vld [vmem:[%s5] sm:$0xf]
    %v1194 = vld [vmem:[%s5 + $0x4] sm:$0xf]
    %v1195 = vld [vmem:[%s5 + $0x8] sm:$0xf]
    %v1196 = vld [vmem:[%s5 + $0xc] sm:$0xf]
    %v1197 = vld [vmem:[%s5 + $0x10] sm:$0xf]
    %v1198 = vld [vmem:[%s5 + $0x14] sm:$0xf]
    %v1199 = vld [vmem:[%s5 + $0x18] sm:$0xf]
    %v1200 = vld [vmem:[%s5 + $0x1c] sm:$0xf]
    %v1201 = vld [vmem:[%s5 + $0x20] sm:$0xf]
    %v1202 = vld [vmem:[%s5 + $0x24] sm:$0xf]
    %v1203 = vld [vmem:[%s5 + $0x28] sm:$0xf]
    %v1204 = vld [vmem:[%s5 + $0x2c] sm:$0xf]
    %v1205 = vld [vmem:[%s5 + $0x30] sm:$0xf]
    %v1206 = vld [vmem:[%s5 + $0x34] sm:$0xf]
    %v1207 = vld [vmem:[%s5 + $0x38] sm:$0xf]
    %v1208 = vld [vmem:[%s5 + $0x3c] sm:$0xf]
    %v1209 = vld [vmem:[%s5 + $0x40] sm:$0xf]
    %v1210 = vld [vmem:[%s5 + $0x44] sm:$0xf]
    %v1211 = vld [vmem:[%s5 + $0x48] sm:$0xf]
    %v1212 = vld [vmem:[%s5 + $0x4c] sm:$0xf]
    %v1213 = vld [vmem:[%s5 + $0x50] sm:$0xf]
    %v1214 = vld [vmem:[%s5 + $0x54] sm:$0xf]
    %v1215 = vld [vmem:[%s5 + $0x58] sm:$0xf]
    %v1216 = vld [vmem:[%s5 + $0x5c] sm:$0xf]
    %v1217 = vld [vmem:[%s5 + $0x60] sm:$0xf]
    %v1218 = vld [vmem:[%s5 + $0x64] sm:$0xf]
    %v1219 = vld [vmem:[%s5 + $0x68] sm:$0xf]
    %v1220 = vld [vmem:[%s5 + $0x6c] sm:$0xf]
    %v1221 = vld [vmem:[%s5 + $0x70] sm:$0xf]
    %v1222 = vld [vmem:[%s5 + $0x74] sm:$0xf]
    %v1223 = vld [vmem:[%s5 + $0x78] sm:$0xf]
    %v1224 = vld [vmem:[%s5 + $0x7c] sm:$0xf]
    %v1225 = vld [vmem:[%s5 + $0x80] sm:$0xf]
    %v1226 = vld [vmem:[%s5 + $0x84] sm:$0xf]
    %v1227 = vld [vmem:[%s5 + $0x88] sm:$0xf]
    %v1228 = vld [vmem:[%s5 + $0x8c] sm:$0xf]
    %v1229 = vld [vmem:[%s5 + $0x90] sm:$0xf]
    %v1230 = vld [vmem:[%s5 + $0x94] sm:$0xf]
    %v1231 = vld [vmem:[%s5 + $0x98] sm:$0xf]
    %v1232 = vld [vmem:[%s5 + $0x9c] sm:$0xf]
    %v1233 = vld [vmem:[%s5 + $0xa0] sm:$0xf]
    %v1234 = vld [vmem:[%s5 + $0xa4] sm:$0xf]
    %v1235 = vld [vmem:[%s5 + $0xa8] sm:$0xf]
    %v1236 = vld [vmem:[%s5 + $0xac] sm:$0xf]
    %v1237 = vld [vmem:[%s5 + $0xb0] sm:$0xf]
    %v1238 = vld [vmem:[%s5 + $0xb4] sm:$0xf]
    %v1239 = vld [vmem:[%s5 + $0xb8] sm:$0xf]
    %v1240 = vld [vmem:[%s5 + $0xbc] sm:$0xf]
    %v1241 = vld [vmem:[%s7] sm:$0x1]
    %v1242 = vld [vmem:[%s6] sm:$0x1]
    %v1244 = vlaneseq
    %v1245 = vshrl.u32 %v1244, 7
    %v1246 = vsub.s32 0, %v1245
    %v1247 = vrot.slane %v1242, %v1246
    %v1297 = vunpack.c.l.b16 %v1193
    %v1298 = vunpack.c.l.b16 %v1194
    %v1299 = vunpack.c.l.b16 %v1195
    %v1300 = vunpack.c.l.b16 %v1196
    %v1301 = vunpack.c.l.b16 %v1197
    %v1302 = vunpack.c.l.b16 %v1198
    %v1303 = vunpack.c.l.b16 %v1199
    %v1304 = vunpack.c.l.b16 %v1200
    %v1305 = vunpack.c.l.b16 %v1201
    %v1306 = vunpack.c.l.b16 %v1202
    %v1307 = vunpack.c.l.b16 %v1203
    %v1308 = vunpack.c.l.b16 %v1204
    %v1309 = vunpack.c.l.b16 %v1205
    %v1310 = vunpack.c.l.b16 %v1206
    %v1311 = vunpack.c.l.b16 %v1207
    %v1312 = vunpack.c.l.b16 %v1208
    %v1313 = vunpack.c.l.b16 %v1209
    %v1314 = vunpack.c.l.b16 %v1210
    %v1315 = vunpack.c.l.b16 %v1211
    %v1316 = vunpack.c.l.b16 %v1212
    %v1317 = vunpack.c.l.b16 %v1213
    %v1318 = vunpack.c.l.b16 %v1214
    %v1319 = vunpack.c.l.b16 %v1215
    %v1320 = vunpack.c.l.b16 %v1216
    %v1321 = vunpack.c.l.b16 %v1217
    %v1322 = vunpack.c.l.b16 %v1218
    %v1323 = vunpack.c.l.b16 %v1219
    %v1324 = vunpack.c.l.b16 %v1220
    %v1325 = vunpack.c.l.b16 %v1221
    %v1326 = vunpack.c.l.b16 %v1222
    %v1327 = vunpack.c.l.b16 %v1223
    %v1328 = vunpack.c.l.b16 %v1224
    %v1329 = vunpack.c.l.b16 %v1225
    %v1330 = vunpack.c.l.b16 %v1226
    %v1331 = vunpack.c.l.b16 %v1227
    %v1332 = vunpack.c.l.b16 %v1228
    %v1333 = vunpack.c.l.b16 %v1229
    %v1334 = vunpack.c.l.b16 %v1230
    %v1335 = vunpack.c.l.b16 %v1231
    %v1336 = vunpack.c.l.b16 %v1232
    %v1337 = vunpack.c.l.b16 %v1233
    %v1338 = vunpack.c.l.b16 %v1234
    %v1339 = vunpack.c.l.b16 %v1235
    %v1340 = vunpack.c.l.b16 %v1236
    %v1341 = vunpack.c.l.b16 %v1237
    %v1342 = vunpack.c.l.b16 %v1238
    %v1343 = vunpack.c.l.b16 %v1239
    %v1344 = vunpack.c.l.b16 %v1240
    %v1345 = vpack.c.b16 %v1298, %v1297
    %v1346 = vpack.c.b16 %v1300, %v1299
    %v1347 = vpack.c.b16 %v1302, %v1301
    %v1348 = vpack.c.b16 %v1304, %v1303
    %v1349 = vpack.c.b16 %v1306, %v1305
    %v1350 = vpack.c.b16 %v1308, %v1307
    %v1351 = vpack.c.b16 %v1310, %v1309
    %v1352 = vpack.c.b16 %v1312, %v1311
    %v1353 = vpack.c.b16 %v1314, %v1313
    %v1354 = vpack.c.b16 %v1316, %v1315
    %v1355 = vpack.c.b16 %v1318, %v1317
    %v1356 = vpack.c.b16 %v1320, %v1319
    %v1357 = vpack.c.b16 %v1322, %v1321
    %v1358 = vpack.c.b16 %v1324, %v1323
    %v1359 = vpack.c.b16 %v1326, %v1325
    %v1360 = vpack.c.b16 %v1328, %v1327
    %v1361 = vpack.c.b16 %v1330, %v1329
    %v1362 = vpack.c.b16 %v1332, %v1331
    %v1363 = vpack.c.b16 %v1334, %v1333
    %v1364 = vpack.c.b16 %v1336, %v1335
    %v1365 = vpack.c.b16 %v1338, %v1337
    %v1366 = vpack.c.b16 %v1340, %v1339
    %v1367 = vpack.c.b16 %v1342, %v1341
    %v1368 = vpack.c.b16 %v1344, %v1343
    %1393 = vmatprep.subr.bf16.mxu0 0
    %1394 = vmatpush1.bf16.msra.mxu0 %v1352
    %1395 = vmatprep.subr.bf16.mxu0 0
    %1396 = vmatpush1.bf16.msra.mxu0 %v1351
    %1397 = vmatprep.subr.bf16.mxu0 0
    %1398 = vmatpush1.bf16.msra.mxu0 %v1350
    %1399 = vmatprep.subr.bf16.mxu0 0
    %1400 = vmatpush1.bf16.msra.mxu0 %v1349
    %1401 = vmatprep.subr.bf16.mxu0 0
    %1402 = vmatpush1.bf16.msra.mxu0 %v1348
    %1403 = vmatprep.subr.bf16.mxu0 0
    %1404 = vmatpush1.bf16.msra.mxu0 %v1347
    %1405 = vmatprep.subr.bf16.mxu0 0
    %1406 = vmatpush1.bf16.msra.mxu0 %v1346
    %1407 = vmatprep.subr.bf16.mxu0 0
    %1408 = vmatpush1.bf16.msra.mxu0 %v1345
    %1409 = vmatprep.subr.bf16.mxu0 0
    %1410 = vmatpush2.bf16.msra.mxu0 %v1360
    %1411 = vmatprep.subr.bf16.mxu0 0
    %1412 = vmatpush2.bf16.msra.mxu0 %v1359
    %1413 = vmatprep.subr.bf16.mxu0 0
    %1414 = vmatpush2.bf16.msra.mxu0 %v1358
    %1415 = vmatprep.subr.bf16.mxu0 0
    %1416 = vmatpush2.bf16.msra.mxu0 %v1357
    %1417 = vmatprep.subr.bf16.mxu0 0
    %1418 = vmatpush2.bf16.msra.mxu0 %v1356
    %1419 = vmatprep.subr.bf16.mxu0 0
    %1420 = vmatpush2.bf16.msra.mxu0 %v1355
    %1421 = vmatprep.subr.bf16.mxu0 0
    %1422 = vmatpush2.bf16.msra.mxu0 %v1354
    %1423 = vmatprep.subr.bf16.mxu0 0
    %1424 = vmatpush2.bf16.msra.mxu0 %v1353
    %1425 = vmatprep.mubr.bf16.mxu0 %v1191
    %1426 = vmatmul.mubr.bf16.gmra.mxu0 %v1190
    %v1427 = vpop.f32.mrf.mxu0
    %v1428 = vadd.f32 %v1247, %v1427
    %v1429 = vpop.f32.mrf.mxu0
    %v1430 = vpop.f32.mrf.mxu0
    %v1431 = vpop.f32.mrf.mxu0
    %1432 = vdwg.mxu0
    %1433 = vmatprep.subr.bf16.mxu0 0
    %1434 = vmatpush1.bf16.msra.mxu0 %v1368
    %1435 = vmatprep.subr.bf16.mxu0 0
    %1436 = vmatpush1.bf16.msra.mxu0 %v1367
    %1437 = vmatprep.subr.bf16.mxu0 0
    %1438 = vmatpush1.bf16.msra.mxu0 %v1366
    %1439 = vmatprep.subr.bf16.mxu0 0
    %1440 = vmatpush1.bf16.msra.mxu0 %v1365
    %1441 = vmatprep.subr.bf16.mxu0 0
    %1442 = vmatpush1.bf16.msra.mxu0 %v1364
    %1443 = vmatprep.subr.bf16.mxu0 0
    %1444 = vmatpush1.bf16.msra.mxu0 %v1363
    %1445 = vmatprep.subr.bf16.mxu0 0
    %1446 = vmatpush1.bf16.msra.mxu0 %v1362
    %1447 = vmatprep.subr.bf16.mxu0 0
    %1448 = vmatpush1.bf16.msra.mxu0 %v1361
    %1449 = vmatprep.subr.bf16.mxu0 0
    %1450 = vmatpush2.bf16.msra.mxu0 0
    %1451 = vmatprep.subr.bf16.mxu0 0
    %1452 = vmatpush2.bf16.msra.mxu0 0
    %1453 = vmatprep.subr.bf16.mxu0 0
    %1454 = vmatpush2.bf16.msra.mxu0 0
    %1455 = vmatprep.subr.bf16.mxu0 0
    %1456 = vmatpush2.bf16.msra.mxu0 0
    %1457 = vmatprep.subr.bf16.mxu0 0
    %1458 = vmatpush2.bf16.msra.mxu0 0
    %1459 = vmatprep.subr.bf16.mxu0 0
    %1460 = vmatpush2.bf16.msra.mxu0 0
    %1461 = vmatprep.subr.bf16.mxu0 0
    %1462 = vmatpush2.bf16.msra.mxu0 0
    %1463 = vmatprep.subr.bf16.mxu0 0
    %1464 = vmatpush2.bf16.msra.mxu0 0
    %1465 = vmatprep.mubr.bf16.mxu0 0
    %1466 = vmatmul.mubr.bf16.gmra.mxu0 %v1192
    %v1467 = vpop.f32.mrf.mxu0
    %v1468 = vadd.f32 %v1428, %v1467
    %v1469 = vpop.f32.mrf.mxu0
    %v1470 = vpop.f32.mrf.mxu0
    %v1471 = vpop.f32.mrf.mxu0
    %1472 = vdwg.mxu0
    %v1473 = vtanh.pop %v1468
    %v1475 = vlaneseq
    %v1476 = vshrl.u32 %v1475, 7
    %v1477 = vsub.s32 0, %v1476
    %v1478 = vrot.slane %v1241, %v1477
    %v1480 = vmul.f32 %v1478, %v1473
    %v1481 = vld [vmem:[%s8] sm:$0x1]
    %v1482 = vadd.f32 %v1480, %v62
    %v1483 = vsub.f32 0.0, %v1481
    %v1485 = vlaneseq
    %v1486 = vshrl.u32 %v1485, 7
    %v1487 = vsub.s32 0, %v1486
    %v1488 = vrot.slane %v1483, %v1487
    %v1490 = vmax.f32 %v1488, %v1482
    %v1492 = vlaneseq
    %v1493 = vshrl.u32 %v1492, 7
    %v1494 = vsub.s32 0, %v1493
    %v1495 = vrot.slane %v1481, %v1494
    %v1497 = vmin.f32 %v1495, %v1490
    %vm1498 = vcmask 261120
    %1499 = vst.msk [vmem:[#allocation7] sm:$0xff] %vm1498, %v1497
    // Predicated region
    $region46: #{tpu_custom_call.1} parent=1 // pred_check
      _
    $region47: #{tpu_custom_call.1} parent=1 // pred_check_branch
      %1501 = sbr.rel (0) target = $region49
    $region48: #{tpu_custom_call.1} parent=1 // pred_region
      %s1503 = ssub.s32 128, 128
      %1504 = vsyncadd [#allocation4], %s1503
      %s1506 = sshll.u32 [#allocation7], 4
      %s1507 = int_to_ptr.vmem [resolvable:$true] %s1506
      %1509 = dma.vmem_to_hbm [thread:$0]  %s1507, 128, %s9, [#allocation4]
    $region49: #{tpu_custom_call.1} parent=1 // pred_fallthru
      _
    // Predicated region
    $region50: #{tpu_custom_call.1} parent=1 // pred_check
      _
    $region51: #{tpu_custom_call.1} parent=1 // pred_check_branch
      %1511 = sbr.rel (0) target = $region53
    $region52: #{tpu_custom_call.1} parent=1 // pred_region
      %1512 = dma.done [#allocation4], 128
    $region53: #{tpu_custom_call.1} parent=1 // pred_fallthru
      _
    %1513 = vsyncpa [#allocation3], 1
    %1514 = vsyncpa [#allocation6], 1
    %1515 = vsyncpa [#allocation4], 1

</llo_original>
